<compile_context>
chip_gen: v6e
topology: v6e:2x2x1
jax: 0.10.0
libtpu: 0.0.40
codegen_flags: <defaults>
</compile_context>

<pallas_src>
import functools

import jax
import jax.numpy as jnp
from jax import lax
from jax.experimental import pallas as pl
from jax.experimental.pallas import tpu as pltpu

BN_EPS = 1e-5          # nn.BatchNorm1d default
NORM_EPS = 1e-12       # F.normalize default


def _pick_tile(d):
    """Hidden-feature tile size: MXU-friendly multiples of 128 when possible."""
    if d % 256 == 0 and d >= 512:
        return 256
    if d % 128 == 0 and d >= 256:
        return 128
    return d            # small / odd emb_dim: single tile (grid of 1)


def _autoencoder_kernel(loss_mode,
                        xy_ref, w1_ref, w2_ref, bn_ref, b2_ref,
                        loss_ref, acc_ref):
    k = pl.program_id(0)
    nk = pl.num_programs(0)

    @pl.when(k == 0)
    def _init():
        acc_ref[...] = jnp.zeros_like(acc_ref)

    x = xy_ref[0]                                      # (B, D), input dtype
    bn = bn_ref[...].astype(jnp.float32)               # (3, tk) tile
    b1, gamma, beta = bn[0:1], bn[1:2], bn[2:3]

    # ---- fc1 for this hidden-feature tile: (B, tk), f32 accumulate on MXU ----
    h = jnp.dot(x, w1_ref[...], preferred_element_type=jnp.float32) + b1

    # ---- BatchNorm1d (training mode: per-feature batch stats, biased var) ----
    n = h.shape[0]
    mean = jnp.sum(h, axis=0, keepdims=True) / n
    mean_sq = jnp.sum(h * h, axis=0, keepdims=True) / n
    var = jnp.maximum(mean_sq - mean * mean, 0.0)      # clamp f32 cancellation
    h = gamma * (h - mean) * lax.rsqrt(var + BN_EPS) + beta

    # ---- ReLU ----
    h = jnp.maximum(h, 0.0)

    # ---- fc2 partial sum over this hidden tile, accumulated in f32 ----
    rhs = w2_ref[...]
    lhs = h if rhs.dtype == jnp.float32 else h.astype(rhs.dtype)
    acc_ref[...] += jnp.dot(lhs, rhs, preferred_element_type=jnp.float32)

    @pl.when(k == nk - 1)
    def _finalize():
        y = xy_ref[1].astype(jnp.float32)
        out = acc_ref[...] + b2_ref[...].astype(jnp.float32)
        if loss_mode == 'l1':
            loss = jnp.sum(jnp.abs(out - y)) / (out.shape[0] * out.shape[1])
        elif loss_mode == 'l2':
            d = out - y
            loss = jnp.sum(d * d) / (out.shape[0] * out.shape[1])
        else:  # cosine
            # F.normalize: x / max(||x||, eps) == x * rsqrt(max(||x||^2, eps^2))
            pss = jnp.sum(out * out, axis=1, keepdims=True)
            zss = jnp.sum(y * y, axis=1, keepdims=True)
            p = out * lax.rsqrt(jnp.maximum(pss, NORM_EPS * NORM_EPS))
            z = y * lax.rsqrt(jnp.maximum(zss, NORM_EPS * NORM_EPS))
            loss = -jnp.sum(p * z) / out.shape[0]
        loss_ref[0, 0] = loss


def autoencoder_loss(x, y, params, *, loss='cosine', detach_target=True):
    """Forward pass of AutoEncoder returning the scalar loss."""
    if loss not in ('l1', 'l2', 'cosine'):
        raise ValueError(f"unknown loss mode: {loss}")
    w1, b1, gamma, beta, w2, b2 = params
    if detach_target:
        y = lax.stop_gradient(y)                       # matches y.detach()

    B, D = x.shape
    tk = _pick_tile(D)
    nk = D // tk

    # Coalesced input slabs -> fewer DMA descriptors.
    xy = jnp.stack([x, y], axis=0)                     # (2, B, D): one DMA
    bn = jnp.stack([b1, gamma, beta], axis=0)          # (3, D): one DMA
    b2m = b2.reshape(1, D)
    # One-time wrapper-side transpose -> MXU-native contraction in-kernel.
    w1_t = w1.T                                        # (in, hidden)
    w2_t = w2.T                                        # (hidden, out)

    it = jnp.dtype(x.dtype).itemsize
    vmem_need = (2 * B * D * it                        # xy slab (resident)
                 + 2 * 2 * D * tk * it                 # w1/w2 tiles, dbl-buffered
                 + 2 * (3 * tk + D) * it               # bn tile + b2
                 + B * D * 4                           # fc2 f32 accumulator
                 + 6 * B * max(tk, D) * 4)             # live intermediates
    vmem_limit = int(min(48 << 20, max(4 << 20, 2 * vmem_need)))

    cost = pl.CostEstimate(
        flops=4 * B * D * D,                           # two (B,D)x(D,D) matmuls
        transcendentals=D + 2 * B,                     # BN rsqrt + cosine rsqrt
        bytes_accessed=2 * B * D * it + 2 * D * D * it + 5 * D * it + 4,
    )

    grid_spec = pltpu.PrefetchScalarGridSpec(
        num_scalar_prefetch=0,
        grid=(nk,),
        in_specs=[
            pl.BlockSpec((2, B, D), lambda k: (0, 0, 0)),   # x / y slab
            pl.BlockSpec((D, tk), lambda k: (0, k)),        # w1^T feature tile
            pl.BlockSpec((tk, D), lambda k: (k, 0)),        # w2^T feature tile
            pl.BlockSpec((3, tk), lambda k: (0, k)),        # b1/gamma/beta tile
            pl.BlockSpec((1, D), lambda k: (0, 0)),         # b2
        ],
        out_specs=pl.BlockSpec((1, 1), lambda k: (0, 0),
                               memory_space=pltpu.MemorySpace.SMEM),
        scratch_shapes=[pltpu.VMEM((B, D), jnp.float32)],   # fc2 accumulator
    )

    kernel = functools.partial(_autoencoder_kernel, loss)
    out = pl.pallas_call(
        kernel,
        out_shape=jax.ShapeDtypeStruct((1, 1), jnp.float32),
        grid_spec=grid_spec,
        compiler_params=pltpu.CompilerParams(
            dimension_semantics=("arbitrary",),             # reduction axis
            vmem_limit_bytes=vmem_limit),
        cost_estimate=cost,
    )(xy, w1_t, w2_t, bn, b2m)
    return out[0, 0]


def _reference_loss(x, y, params, loss='cosine'):
    w1, b1, gamma, beta, w2, b2 = params
    h = x @ w1.T + b1
    mean = h.mean(0)
    var = ((h - mean) ** 2).mean(0)
    h = gamma * (h - mean) / jnp.sqrt(var + BN_EPS) + beta
    h = jnp.maximum(h, 0.0)
    out = h @ w2.T + b2
    if loss == 'l1':
        return jnp.mean(jnp.abs(out - y))
    if loss == 'l2':
        return jnp.mean((out - y) ** 2)
    p = out / jnp.maximum(jnp.linalg.norm(out, axis=1, keepdims=True), NORM_EPS)
    z = y / jnp.maximum(jnp.linalg.norm(y, axis=1, keepdims=True), NORM_EPS)
    return jnp.mean(-(p * z).sum(1))


def _make_problem(key, batch, emb_dim):
    kx, ky, kw1, kb1, kw2, kb2 = jax.random.split(key, 6)
    x = jax.random.normal(kx, (batch, emb_dim), jnp.float32)
    y = jax.random.normal(ky, (batch, emb_dim), jnp.float32)
    bound = 1.0 / float(jnp.sqrt(emb_dim))
    w1 = jax.random.uniform(kw1, (emb_dim, emb_dim), jnp.float32, -bound, bound)
    b1 = jax.random.uniform(kb1, (emb_dim,), jnp.float32, -bound, bound)
    gamma = jnp.ones((emb_dim,), jnp.float32)   # BatchNorm1d weight
    beta = jnp.zeros((emb_dim,), jnp.float32)   # BatchNorm1d bias
    w2 = jax.random.uniform(kw2, (emb_dim, emb_dim), jnp.float32, -bound, bound)
    b2 = jax.random.uniform(kb2, (emb_dim,), jnp.float32, -bound, bound)
    return x, y, (w1, b1, gamma, beta, w2, b2)


if __name__ == "__main__":
    key = jax.random.PRNGKey(0)
    k1, k2 = jax.random.split(key)

    # Small shape (grid of 1 step) and a slightly larger shape that exercises
    # the multi-tile accumulation path (grid of 2 steps).
    for kk, (batch, emb_dim) in ((k1, (8, 32)), (k2, (8, 256))):
        x, y, params = _make_problem(kk, batch, emb_dim)
        for mode in ('cosine', 'l1', 'l2'):
            loss = autoencoder_loss(x, y, params, loss=mode, detach_target=True)
            loss = jax.block_until_ready(loss)
            ref = _reference_loss(x, y, params, loss=mode)
            assert jnp.allclose(loss, ref, atol=2e-5, rtol=2e-5), (
                (batch, emb_dim), mode, loss, ref)

    print("KERNEL_OK")
</pallas_src>

<mosaic_0001>
module attributes {stable_mosaic.version = 11 : i64} {
  func.func @_autoencoder_kernel(%arg0: i32, %arg1: memref<2x8x32xf32, #tpu.memory_space<vmem>>, %arg2: memref<32x32xf32, #tpu.memory_space<vmem>>, %arg3: memref<32x32xf32, #tpu.memory_space<vmem>>, %arg4: memref<3x32xf32, #tpu.memory_space<vmem>>, %arg5: memref<1x32xf32, #tpu.memory_space<vmem>>, %arg6: memref<1x1xf32, #tpu.memory_space<smem>>, %arg7: memref<8x32xf32, #tpu.memory_space<vmem>>) attributes {dimension_semantics = [#tpu.dimension_semantics<arbitrary>], iteration_bounds = array<i64: 1>, scalar_prefetch = 0 : i64, scratch_operands = 1 : i64, tpu.core_type = #tpu.core_type<tc>, window_params = [{pipeline_mode = #tpu.pipeline_mode<synchronous>, transform_indices = @transform_0, window_bounds = array<i64: 2, 8, 32>}, {transform_indices = @transform_1, window_bounds = array<i64: 32, 32>}, {transform_indices = @transform_2, window_bounds = array<i64: 32, 32>}, {transform_indices = @transform_3, window_bounds = array<i64: 3, 32>}, {pipeline_mode = #tpu.pipeline_mode<synchronous>, transform_indices = @transform_4, window_bounds = array<i64: 1, 32>}, {transform_indices = @transform_5, window_bounds = array<i64: 1, 1>}]} {
    %c0_i32 = arith.constant 0 : i32
    %0 = arith.cmpi eq, %arg0, %c0_i32 : i32
    %1 = arith.extui %0 : i1 to i32
    %c0_i32_0 = arith.constant 0 : i32
    %2 = arith.cmpi ne, %1, %c0_i32_0 : i32
    scf.if %2 {
      %cst_23 = arith.constant 0.000000e+00 : f32
      %47 = vector.broadcast %cst_23 : f32 to vector<8x32xf32>
      %c0_24 = arith.constant 0 : index
      %c0_25 = arith.constant 0 : index
      %48 = vector.load %arg7[%c0_24, %c0_25] : memref<8x32xf32, #tpu.memory_space<vmem>>, vector<8x32xf32>
      tpu.vector_store %arg7[%c0_24, %c0_25], %47 {strides = array<i32>} : memref<8x32xf32, #tpu.memory_space<vmem>>, vector<8x32xf32>,
    } else {
    }
    %c0 = arith.constant 0 : index
    %c0_1 = arith.constant 0 : index
    %c0_2 = arith.constant 0 : index
    %3 = vector.load %arg1[%c0, %c0_1, %c0_2] : memref<2x8x32xf32, #tpu.memory_space<vmem>>, vector<1x8x32xf32>
    %4 = vector.shape_cast %3 : vector<1x8x32xf32> to vector<8x32xf32>
    %c0_3 = arith.constant 0 : index
    %c0_4 = arith.constant 0 : index
    %5 = vector.load %arg4[%c0_3, %c0_4] : memref<3x32xf32, #tpu.memory_space<vmem>>, vector<3x32xf32>
    %6 = vector.extract_strided_slice %5 {offsets = [0, 0], sizes = [1, 32], strides = [1, 1]} : vector<3x32xf32> to vector<1x32xf32>
    %7 = vector.extract_strided_slice %5 {offsets = [1, 0], sizes = [1, 32], strides = [1, 1]} : vector<3x32xf32> to vector<1x32xf32>
    %8 = vector.extract_strided_slice %5 {offsets = [2, 0], sizes = [1, 32], strides = [1, 1]} : vector<3x32xf32> to vector<1x32xf32>
    %c0_5 = arith.constant 0 : index
    %c0_6 = arith.constant 0 : index
    %9 = vector.load %arg2[%c0_5, %c0_6] : memref<32x32xf32, #tpu.memory_space<vmem>>, vector<32x32xf32>
    %cst = arith.constant dense<0.000000e+00> : vector<8x32xf32>
    %10 = tpu.matmul %4, %9, %cst {dimension_numbers = #tpu.dot_dimension_numbers<[1], [0], [0], [1], [0, 0, 1, 1], [], []>} : vector<8x32xf32>, vector<32x32xf32>, vector<8x32xf32> -> vector<8x32xf32>
    %11 = vector.broadcast %6 : vector<1x32xf32> to vector<8x32xf32>
    %12 = arith.addf %10, %11 : vector<8x32xf32>
    %cst_7 = arith.constant dense<0.000000e+00> : vector<32xf32>
    %13 = vector.multi_reduction <add>, %12, %cst_7 [0] : vector<8x32xf32> to vector<32xf32>
    %14 = vector.shape_cast %13 : vector<32xf32> to vector<1x32xf32>
    %cst_8 = arith.constant 8.000000e+00 : f32
    %15 = vector.broadcast %cst_8 : f32 to vector<1x32xf32>
    %16 = arith.divf %14, %15 : vector<1x32xf32>
    %17 = arith.mulf %12, %12 : vector<8x32xf32>
    %cst_9 = arith.constant dense<0.000000e+00> : vector<32xf32>
    %18 = vector.multi_reduction <add>, %17, %cst_9 [0] : vector<8x32xf32> to vector<32xf32>
    %19 = vector.shape_cast %18 : vector<32xf32> to vector<1x32xf32>
    %cst_10 = arith.constant 8.000000e+00 : f32
    %20 = vector.broadcast %cst_10 : f32 to vector<1x32xf32>
    %21 = arith.divf %19, %20 : vector<1x32xf32>
    %22 = arith.mulf %16, %16 : vector<1x32xf32>
    %23 = arith.subf %21, %22 : vector<1x32xf32>
    %cst_11 = arith.constant 0.000000e+00 : f32
    %24 = vector.broadcast %cst_11 : f32 to vector<1x32xf32>
    %25 = arith.maximumf %23, %24 : vector<1x32xf32>
    %26 = vector.broadcast %16 : vector<1x32xf32> to vector<8x32xf32>
    %27 = arith.subf %12, %26 : vector<8x32xf32>
    %28 = vector.broadcast %7 : vector<1x32xf32> to vector<8x32xf32>
    %29 = arith.mulf %28, %27 : vector<8x32xf32>
    %cst_12 = arith.constant 9.99999974E-6 : f32
    %30 = vector.broadcast %cst_12 : f32 to vector<1x32xf32>
    %31 = arith.addf %25, %30 : vector<1x32xf32>
    %32 = math.rsqrt %31 : vector<1x32xf32>
    %33 = vector.broadcast %32 : vector<1x32xf32> to vector<8x32xf32>
    %34 = arith.mulf %29, %33 : vector<8x32xf32>
    %35 = vector.broadcast %8 : vector<1x32xf32> to vector<8x32xf32>
    %36 = arith.addf %34, %35 : vector<8x32xf32>
    %cst_13 = arith.constant 0.000000e+00 : f32
    %37 = vector.broadcast %cst_13 : f32 to vector<8x32xf32>
    %38 = arith.maximumf %36, %37 : vector<8x32xf32>
    %c0_14 = arith.constant 0 : index
    %c0_15 = arith.constant 0 : index
    %39 = vector.load %arg3[%c0_14, %c0_15] : memref<32x32xf32, #tpu.memory_space<vmem>>, vector<32x32xf32>
    %c0_16 = arith.constant 0 : index
    %c0_17 = arith.constant 0 : index
    %40 = vector.load %arg7[%c0_16, %c0_17] : memref<8x32xf32, #tpu.memory_space<vmem>>, vector<8x32xf32>
    %cst_18 = arith.constant dense<0.000000e+00> : vector<8x32xf32>
    %41 = tpu.matmul %38, %39, %cst_18 {dimension_numbers = #tpu.dot_dimension_numbers<[1], [0], [0], [1], [0, 0, 1, 1], [], []>} : vector<8x32xf32>, vector<32x32xf32>, vector<8x32xf32> -> vector<8x32xf32>
    %42 = arith.addf %40, %41 : vector<8x32xf32>
    %c0_19 = arith.constant 0 : index
    %c0_20 = arith.constant 0 : index
    %43 = vector.load %arg7[%c0_19, %c0_20] : memref<8x32xf32, #tpu.memory_space<vmem>>, vector<8x32xf32>
    tpu.vector_store %arg7[%c0_19, %c0_20], %42 {strides = array<i32>} : memref<8x32xf32, #tpu.memory_space<vmem>>, vector<8x32xf32>,
    %c0_i32_21 = arith.constant 0 : i32
    %44 = arith.cmpi eq, %arg0, %c0_i32_21 : i32
    %45 = arith.extui %44 : i1 to i32
    %c0_i32_22 = arith.constant 0 : i32
    %46 = arith.cmpi ne, %45, %c0_i32_22 : i32
    scf.if %46 {
      %c1 = arith.constant 1 : index
      %c0_23 = arith.constant 0 : index
      %c0_24 = arith.constant 0 : index
      %47 = vector.load %arg1[%c1, %c0_23, %c0_24] : memref<2x8x32xf32, #tpu.memory_space<vmem>>, vector<1x8x32xf32>
      %48 = vector.shape_cast %47 : vector<1x8x32xf32> to vector<8x32xf32>
      %c0_25 = arith.constant 0 : index
      %c0_26 = arith.constant 0 : index
      %49 = vector.load %arg7[%c0_25, %c0_26] : memref<8x32xf32, #tpu.memory_space<vmem>>, vector<8x32xf32>
      %c0_27 = arith.constant 0 : index
      %c0_28 = arith.constant 0 : index
      %50 = vector.load %arg5[%c0_27, %c0_28] : memref<1x32xf32, #tpu.memory_space<vmem>>, vector<1x32xf32>
      %51 = vector.broadcast %50 : vector<1x32xf32> to vector<8x32xf32>
      %52 = arith.addf %49, %51 : vector<8x32xf32>
      %53 = arith.mulf %52, %52 : vector<8x32xf32>
      %cst_29 = arith.constant dense<0.000000e+00> : vector<8xf32>
      %54 = vector.multi_reduction <add>, %53, %cst_29 [1] : vector<8x32xf32> to vector<8xf32>
      %55 = vector.shape_cast %54 : vector<8xf32> to vector<8x1xf32>
      %56 = arith.mulf %48, %48 : vector<8x32xf32>
      %cst_30 = arith.constant dense<0.000000e+00> : vector<8xf32>
      %57 = vector.multi_reduction <add>, %56, %cst_30 [1] : vector<8x32xf32> to vector<8xf32>
      %58 = vector.shape_cast %57 : vector<8xf32> to vector<8x1xf32>
      %cst_31 = arith.constant 1.000000e-24 : f32
      %59 = vector.broadcast %cst_31 : f32 to vector<8x1xf32>
      %60 = arith.maximumf %55, %59 : vector<8x1xf32>
      %61 = math.rsqrt %60 : vector<8x1xf32>
      %62 = vector.broadcast %61 : vector<8x1xf32> to vector<8x32xf32>
      %63 = arith.mulf %52, %62 : vector<8x32xf32>
      %cst_32 = arith.constant 1.000000e-24 : f32
      %64 = vector.broadcast %cst_32 : f32 to vector<8x1xf32>
      %65 = arith.maximumf %58, %64 : vector<8x1xf32>
      %66 = math.rsqrt %65 : vector<8x1xf32>
      %67 = vector.broadcast %66 : vector<8x1xf32> to vector<8x32xf32>
      %68 = arith.mulf %48, %67 : vector<8x32xf32>
      %69 = arith.mulf %63, %68 : vector<8x32xf32>
      %70 = vector.shape_cast %69 : vector<8x32xf32> to vector<1x8x32xf32>
      %cst_33 = arith.constant dense<0.000000e+00> : vector<1xf32>
      %71 = vector.multi_reduction <add>, %70, %cst_33 [1, 2] : vector<1x8x32xf32> to vector<1xf32>
      %72 = vector.shape_cast %71 : vector<1xf32> to vector<1x1x1xf32>
      %73 = vector.extract %72[0, 0, 0] : f32 from vector<1x1x1xf32>
      %cst_34 = arith.constant 0.000000e+00 : f32
      %74 = arith.subf %cst_34, %73 : f32
      %cst_35 = arith.constant 8.000000e+00 : f32
      %75 = arith.divf %74, %cst_35 : f32
      %c0_36 = arith.constant 0 : index
      %c0_37 = arith.constant 0 : index
      %76 = memref.load %arg6[%c0_36, %c0_37] : memref<1x1xf32, #tpu.memory_space<smem>>
      memref.store %75, %arg6[%c0_36, %c0_37] : memref<1x1xf32, #tpu.memory_space<smem>>
    } else {
    }
    return
  }
  func.func @transform_0(%arg0: i32) -> (i32, i32, i32) {
    %c0_i32 = arith.constant 0 : i32
    %c0_i32_0 = arith.constant 0 : i32
    %c0_i32_1 = arith.constant 0 : i32
    %c0_i32_2 = arith.constant 0 : i32
    return %c0_i32, %c0_i32_0, %c0_i32_1 : i32, i32, i32
  }
  func.func @transform_1(%arg0: i32) -> (i32, i32) {
    %c0_i32 = arith.constant 0 : i32
    %c0_i32_0 = arith.constant 0 : i32
    return %c0_i32, %arg0 : i32, i32
  }
  func.func @transform_2(%arg0: i32) -> (i32, i32) {
    %c0_i32 = arith.constant 0 : i32
    %c0_i32_0 = arith.constant 0 : i32
    return %arg0, %c0_i32 : i32, i32
  }
  func.func @transform_3(%arg0: i32) -> (i32, i32) {
    %c0_i32 = arith.constant 0 : i32
    %c0_i32_0 = arith.constant 0 : i32
    return %c0_i32, %arg0 : i32, i32
  }
  func.func @transform_4(%arg0: i32) -> (i32, i32) {
    %c0_i32 = arith.constant 0 : i32
    %c0_i32_0 = arith.constant 0 : i32
    %c0_i32_1 = arith.constant 0 : i32
    return %c0_i32, %c0_i32_0 : i32, i32
  }
  func.func @transform_5(%arg0: i32) -> (i32, i32) {
    %c0_i32 = arith.constant 0 : i32
    %c0_i32_0 = arith.constant 0 : i32
    %c0_i32_1 = arith.constant 0 : i32
    return %c0_i32, %c0_i32_0 : i32, i32
  }
}

</mosaic_0001>

<llo_original>
// kernel: tpu_custom_call.1
$region0: #{tpu_custom_call.1}
  #allocation0 [shape = 'u32[]', space=smem, size = 0x4, offset = 0x4, fixed_abs, tag = 'smem constant byte address 0x4 - core index']
  #allocation1 [shape = 'u32[144,128]{1,0:T(1,128)}', space=vmem, size = 0x12000, scoped, tag = 'internal scratch']
  #allocation2 [shape = 'f32[8,32]{1,0:T(8,128)}', space=vmem, size = 0x1000, scoped, tag = 'scratch operand']
  %s0 = inlined_call_operand.hbm [shape: f32[2,8,32], index: 0, kind: input, shape index: {}]
  %s1 = inlined_call_operand.hbm [shape: f32[32,32], index: 1, kind: input, shape index: {}]
  %s2 = inlined_call_operand.hbm [shape: f32[32,32], index: 2, kind: input, shape index: {}]
  %s3 = inlined_call_operand.vmem [shape: f32[3,32], index: 3, kind: input, shape index: {}]
  %s4 = inlined_call_operand.vmem [shape: f32[1,32], index: 4, kind: input, shape index: {}]
  %s5 = inlined_call_operand.hbm [shape: f32[1,1], index: 5, kind: output, shape index: {}]
  %s6 = sld [smem:[#allocation0]]
  $region50: #{tpu_custom_call.1} parent=0
    _
  %s8 = ssub.s32 1, %s6
  %s9 = scalar_select 0, %s8, %s6
  $region1: #{tpu_custom_call.1} parent=0
    #allocation3 [shape = 'u8[8192]{0}', space=vmem, size = 0x2000, scoped, tag = 'input window, operand 0, single buffered']
    #allocation4 [shape = 's32[1]{0}', space=sflag, size = 0x4, scoped, tag = 'scoped memory for tpu_custom_call.1']
    #allocation5 [shape = 's32[1]{0}', space=sflag, size = 0x4, scoped, tag = 'scoped memory for tpu_custom_call.1']
    #allocation6 [shape = 'u8[16384]{0}', space=vmem, size = 0x4000, scoped, tag = 'input window, operand 1, single buffered']
    #allocation7 [shape = 's32[1]{0}', space=sflag, size = 0x4, scoped, tag = 'scoped memory for tpu_custom_call.1']
    #allocation8 [shape = 'u8[16384]{0}', space=vmem, size = 0x4000, scoped, tag = 'input window, operand 2, single buffered']
    #allocation9 [shape = 'u8[512]{0}', space=smem, size = 0x200, scoped, tag = 'output window, operand 0, single buffered']
    %10 = vsyncpa [#allocation4], 0
    %11 = vsyncpa [#allocation7], 0
    %12 = vsyncpa [#allocation5], 0
    // Predicated region
    $region2: #{tpu_custom_call.1} parent=1 // pred_check
      _
    $region3: #{tpu_custom_call.1} parent=1 // pred_check_branch
      %14 = sbr.rel (0) target = $region5
    $region4: #{tpu_custom_call.1} parent=1 // pred_region
      %s16 = ssub.s32 256, 256
      %17 = vsyncadd [#allocation4], %s16
      %s18 = sshll.u32 [#allocation3], 4
      %s19 = int_to_ptr.vmem [resolvable:$true] %s18
      %24 = dma.hbm_to_vmem [thread:$0]  %s0, 256, %s19, [#allocation4], 128, 128, 8
    $region5: #{tpu_custom_call.1} parent=1 // pred_fallthru
      _
    // Predicated region
    $region6: #{tpu_custom_call.1} parent=1 // pred_check
      _
    $region7: #{tpu_custom_call.1} parent=1 // pred_check_branch
      %26 = sbr.rel (0) target = $region9
    $region8: #{tpu_custom_call.1} parent=1 // pred_region
      %s28 = ssub.s32 512, 512
      %29 = vsyncadd [#allocation7], %s28
      %s30 = sshll.u32 [#allocation6], 4
      %s31 = int_to_ptr.vmem [resolvable:$true] %s30
      %36 = dma.hbm_to_vmem [thread:$0]  %s1, 512, %s31, [#allocation7], 128, 128, 8
    $region9: #{tpu_custom_call.1} parent=1 // pred_fallthru
      _
    // Predicated region
    $region10: #{tpu_custom_call.1} parent=1 // pred_check
      _
    $region11: #{tpu_custom_call.1} parent=1 // pred_check_branch
      %38 = sbr.rel (0) target = $region13
    $region12: #{tpu_custom_call.1} parent=1 // pred_region
      %s40 = ssub.s32 512, 512
      %41 = vsyncadd [#allocation7], %s40
      %s42 = sshll.u32 [#allocation8], 4
      %s43 = int_to_ptr.vmem [resolvable:$true] %s42
      %48 = dma.hbm_to_vmem [thread:$0]  %s2, 512, %s43, [#allocation7], 128, 128, 8
    $region13: #{tpu_custom_call.1} parent=1 // pred_fallthru
      _
    // Predicated region
    $region14: #{tpu_custom_call.1} parent=1 // pred_check
      _
    $region15: #{tpu_custom_call.1} parent=1 // pred_check_branch
      %50 = sbr.rel (0) target = $region17
    $region16: #{tpu_custom_call.1} parent=1 // pred_region
      _
    $region17: #{tpu_custom_call.1} parent=1 // pred_fallthru
      _
    // Predicated region
    $region18: #{tpu_custom_call.1} parent=1 // pred_check
      _
    $region19: #{tpu_custom_call.1} parent=1 // pred_check_branch
      %52 = sbr.rel (0) target = $region21
    $region20: #{tpu_custom_call.1} parent=1 // pred_region
      _
    $region21: #{tpu_custom_call.1} parent=1 // pred_fallthru
      _
    // Predicated region
    $region22: #{tpu_custom_call.1} parent=1 // pred_check
      _
    $region23: #{tpu_custom_call.1} parent=1 // pred_check_branch
      %54 = sbr.rel (0) target = $region25
    $region24: #{tpu_custom_call.1} parent=1 // pred_region
      %55 = dma.done [#allocation4], 256
    $region25: #{tpu_custom_call.1} parent=1 // pred_fallthru
      _
    // Predicated region
    $region26: #{tpu_custom_call.1} parent=1 // pred_check
      _
    $region27: #{tpu_custom_call.1} parent=1 // pred_check_branch
      %57 = sbr.rel (0) target = $region29
    $region28: #{tpu_custom_call.1} parent=1 // pred_region
      %58 = dma.done [#allocation7], 512
    $region29: #{tpu_custom_call.1} parent=1 // pred_fallthru
      _
    // Predicated region
    $region30: #{tpu_custom_call.1} parent=1 // pred_check
      _
    $region31: #{tpu_custom_call.1} parent=1 // pred_check_branch
      %60 = sbr.rel (0) target = $region33
    $region32: #{tpu_custom_call.1} parent=1 // pred_region
      %61 = dma.done [#allocation7], 512
    $region33: #{tpu_custom_call.1} parent=1 // pred_fallthru
      _
    %p62 = scmp.eq.s32.totalorder 0, 0
    // Predicated region
    $region34: #{tpu_custom_call.1} parent=1 // pred_check
      %p63 = pneg %p62
    $region35: #{tpu_custom_call.1} parent=1 // pred_check_branch
      %65 = sbr.rel (%p63) target = $region37
    $region36: #{tpu_custom_call.1} parent=1 // pred_region
      %vm66 = vcmask 261120
      %67 = vst.msk [vmem:[#allocation2] sm:$0xff] %vm66, 0.0
    $region37: #{tpu_custom_call.1} parent=1 // pred_fallthru
      _
    %v68 = vld [vmem:[#allocation3] sm:$0xff]
    %v69 = vld [vmem:[%s3] sm:$0x7]
    %v70 = vld [vmem:[#allocation6] sm:$0xff]
    %v71 = vld [vmem:[#allocation6 + $0x8] sm:$0xff]
    %v72 = vld [vmem:[#allocation6 + $0x10] sm:$0xff]
    %v73 = vld [vmem:[#allocation6 + $0x18] sm:$0xff]
    %v74 = vlaneseq
    %v75 = vshrl.u32 %v74, 7
    %v76 = vsub.s32 0, %v75
    %v77 = vrot.slane %v69, %v76
    %vm78 = vcmask 261120
    %v80 = vsel %vm78, %v68, 0
    %82 = vmatprep.subr.mxu0 0.0
    %83 = vmatpush1.msra.mxu0 0.0
    %84 = vmatprep.subr.mxu0 0.0
    %85 = vmatpush1.msra.mxu0 0.0
    %86 = vmatprep.subr.mxu0 0.0
    %87 = vmatpush1.msra.mxu0 0.0
    %88 = vmatprep.subr.mxu0 0.0
    %89 = vmatpush1.msra.mxu0 0.0
    %90 = vmatprep.subr.mxu0 0.0
    %91 = vmatpush1.msra.mxu0 0.0
    %92 = vmatprep.subr.mxu0 0.0
    %93 = vmatpush1.msra.mxu0 0.0
    %94 = vmatprep.subr.mxu0 0.0
    %95 = vmatpush1.msra.mxu0 0.0
    %96 = vmatprep.subr.mxu0 0.0
    %97 = vmatpush1.msra.mxu0 0.0
    %98 = vmatprep.subr.mxu0 0.0
    %99 = vmatpush1.msra.mxu0 0.0
    %100 = vmatprep.subr.mxu0 0.0
    %101 = vmatpush1.msra.mxu0 0.0
    %102 = vmatprep.subr.mxu0 0.0
    %103 = vmatpush1.msra.mxu0 0.0
    %104 = vmatprep.subr.mxu0 0.0
    %105 = vmatpush1.msra.mxu0 0.0
    %106 = vmatprep.subr.mxu0 0.0
    %107 = vmatpush1.msra.mxu0 %v73
    %108 = vmatprep.subr.mxu0 0.0
    %109 = vmatpush1.msra.mxu0 %v72
    %110 = vmatprep.subr.mxu0 0.0
    %111 = vmatpush1.msra.mxu0 %v71
    %112 = vmatprep.subr.mxu0 0.0
    %113 = vmatpush1.msra.mxu0 %v70
    %114 = vmatprep.subr.mxu0 0.0
    %115 = vmatpush2.msra.mxu0 0.0
    %116 = vmatprep.subr.mxu0 0.0
    %117 = vmatpush2.msra.mxu0 0.0
    %118 = vmatprep.subr.mxu0 0.0
    %119 = vmatpush2.msra.mxu0 0.0
    %120 = vmatprep.subr.mxu0 0.0
    %121 = vmatpush2.msra.mxu0 0.0
    %122 = vmatprep.subr.mxu0 0.0
    %123 = vmatpush2.msra.mxu0 0.0
    %124 = vmatprep.subr.mxu0 0.0
    %125 = vmatpush2.msra.mxu0 0.0
    %126 = vmatprep.subr.mxu0 0.0
    %127 = vmatpush2.msra.mxu0 0.0
    %128 = vmatprep.subr.mxu0 0.0
    %129 = vmatpush2.msra.mxu0 0.0
    %130 = vmatprep.subr.mxu0 0.0
    %131 = vmatpush2.msra.mxu0 0.0
    %132 = vmatprep.subr.mxu0 0.0
    %133 = vmatpush2.msra.mxu0 0.0
    %134 = vmatprep.subr.mxu0 0.0
    %135 = vmatpush2.msra.mxu0 0.0
    %136 = vmatprep.subr.mxu0 0.0
    %137 = vmatpush2.msra.mxu0 0.0
    %138 = vmatprep.subr.mxu0 0.0
    %139 = vmatpush2.msra.mxu0 0.0
    %140 = vmatprep.subr.mxu0 0.0
    %141 = vmatpush2.msra.mxu0 0.0
    %142 = vmatprep.subr.mxu0 0.0
    %143 = vmatpush2.msra.mxu0 0.0
    %144 = vmatprep.subr.mxu0 0.0
    %145 = vmatpush2.msra.mxu0 0.0
    %146 = vmatprep.mubr.f32.mxu0 0.0
    %147 = vmatmul.mubr.f32.gmra.mxu0 %v80
    %v148 = vpop.f32.mrf.mxu0
    %v149 = vadd.f32 %v77, %v148
    %v150 = vpop.f32.mrf.mxu0
    %151 = vdwg.mxu0
    %v152 = vsel %vm78, %v149, 0.0
    %v153 = vrot.slane %v152, 4
    %v154 = vadd.f32 %v152, %v153
    %v155 = vrot.slane %v154, 2
    %v156 = vadd.f32 %v154, %v155
    %v157 = vrot.slane %v156, 1
    %v158 = vadd.f32 %v156, %v157
    %v159 = vrcp.pop 8.0
    %v160 = vmul.f32 %v158, %v159
    %v161 = vmul.f32 %v149, %v149
    %v162 = vsel %vm78, %v161, 0.0
    %v163 = vrot.slane %v162, 4
    %v164 = vadd.f32 %v162, %v163
    %v165 = vrot.slane %v164, 2
    %v166 = vadd.f32 %v164, %v165
    %v167 = vrot.slane %v166, 1
    %v168 = vadd.f32 %v166, %v167
    %v169 = vmul.f32 %v168, %v159
    %v170 = vmul.f32 %v160, %v160
    %v171 = vsub.f32 %v169, %v170
    %v172 = vmax.f32 %v171, 0.0
    %v173 = vsub.f32 %v149, %v160
    %v174 = vlaneseq
    %v175 = vshrl.u32 %v174, 7
    %v176 = vsub.s32 1, %v175
    %v177 = vrot.slane %v69, %v176
    %v178 = vmul.f32 %v177, %v173
    %v179 = vadd.f32 %v172, 1e-05
    %v180 = vrsqrt.pop %v179
    %v181 = vmul.f32 %v178, %v180
    %v182 = vlaneseq
    %v183 = vshrl.u32 %v182, 7
    %v184 = vsub.s32 2, %v183
    %v185 = vrot.slane %v69, %v184
    %v186 = vadd.f32 %v181, %v185
    %v187 = vmax.f32 %v186, 0.0
    %v188 = vld [vmem:[#allocation8] sm:$0xff]
    %v189 = vld [vmem:[#allocation8 + $0x8] sm:$0xff]
    %v190 = vld [vmem:[#allocation8 + $0x10] sm:$0xff]
    %v191 = vld [vmem:[#allocation8 + $0x18] sm:$0xff]
    %v192 = vld [vmem:[#allocation2] sm:$0xff]
    %v194 = vsel %vm78, %v187, 0
    %196 = vmatprep.subr.mxu0 0.0
    %197 = vmatpush1.msra.mxu0 0.0
    %198 = vmatprep.subr.mxu0 0.0
    %199 = vmatpush1.msra.mxu0 0.0
    %200 = vmatprep.subr.mxu0 0.0
    %201 = vmatpush1.msra.mxu0 0.0
    %202 = vmatprep.subr.mxu0 0.0
    %203 = vmatpush1.msra.mxu0 0.0
    %204 = vmatprep.subr.mxu0 0.0
    %205 = vmatpush1.msra.mxu0 0.0
    %206 = vmatprep.subr.mxu0 0.0
    %207 = vmatpush1.msra.mxu0 0.0
    %208 = vmatprep.subr.mxu0 0.0
    %209 = vmatpush1.msra.mxu0 0.0
    %210 = vmatprep.subr.mxu0 0.0
    %211 = vmatpush1.msra.mxu0 0.0
    %212 = vmatprep.subr.mxu0 0.0
    %213 = vmatpush1.msra.mxu0 0.0
    %214 = vmatprep.subr.mxu0 0.0
    %215 = vmatpush1.msra.mxu0 0.0
    %216 = vmatprep.subr.mxu0 0.0
    %217 = vmatpush1.msra.mxu0 0.0
    %218 = vmatprep.subr.mxu0 0.0
    %219 = vmatpush1.msra.mxu0 0.0
    %220 = vmatprep.subr.mxu0 0.0
    %221 = vmatpush1.msra.mxu0 %v191
    %222 = vmatprep.subr.mxu0 0.0
    %223 = vmatpush1.msra.mxu0 %v190
    %224 = vmatprep.subr.mxu0 0.0
    %225 = vmatpush1.msra.mxu0 %v189
    %226 = vmatprep.subr.mxu0 0.0
    %227 = vmatpush1.msra.mxu0 %v188
    %228 = vmatprep.subr.mxu0 0.0
    %229 = vmatpush2.msra.mxu0 0.0
    %230 = vmatprep.subr.mxu0 0.0
    %231 = vmatpush2.msra.mxu0 0.0
    %232 = vmatprep.subr.mxu0 0.0
    %233 = vmatpush2.msra.mxu0 0.0
    %234 = vmatprep.subr.mxu0 0.0
    %235 = vmatpush2.msra.mxu0 0.0
    %236 = vmatprep.subr.mxu0 0.0
    %237 = vmatpush2.msra.mxu0 0.0
    %238 = vmatprep.subr.mxu0 0.0
    %239 = vmatpush2.msra.mxu0 0.0
    %240 = vmatprep.subr.mxu0 0.0
    %241 = vmatpush2.msra.mxu0 0.0
    %242 = vmatprep.subr.mxu0 0.0
    %243 = vmatpush2.msra.mxu0 0.0
    %244 = vmatprep.subr.mxu0 0.0
    %245 = vmatpush2.msra.mxu0 0.0
    %246 = vmatprep.subr.mxu0 0.0
    %247 = vmatpush2.msra.mxu0 0.0
    %248 = vmatprep.subr.mxu0 0.0
    %249 = vmatpush2.msra.mxu0 0.0
    %250 = vmatprep.subr.mxu0 0.0
    %251 = vmatpush2.msra.mxu0 0.0
    %252 = vmatprep.subr.mxu0 0.0
    %253 = vmatpush2.msra.mxu0 0.0
    %254 = vmatprep.subr.mxu0 0.0
    %255 = vmatpush2.msra.mxu0 0.0
    %256 = vmatprep.subr.mxu0 0.0
    %257 = vmatpush2.msra.mxu0 0.0
    %258 = vmatprep.subr.mxu0 0.0
    %259 = vmatpush2.msra.mxu0 0.0
    %260 = vmatprep.mubr.f32.mxu0 0.0
    %261 = vmatmul.mubr.f32.gmra.mxu0 %v194
    %v262 = vpop.f32.mrf.mxu0
    %v263 = vadd.f32 0.0, %v262
    %v264 = vpop.f32.mrf.mxu0
    %265 = vdwg.mxu0
    %v266 = vadd.f32 %v192, %v263
    %267 = vst.msk [vmem:[#allocation2] sm:$0xff] %vm78, %v266
    // Predicated region
    $region38: #{tpu_custom_call.1} parent=1 // pred_check
      %p268 = pneg %p62
    $region39: #{tpu_custom_call.1} parent=1 // pred_check_branch
      %270 = sbr.rel (%p268) target = $region41
    $region40: #{tpu_custom_call.1} parent=1 // pred_region
      %s271 = scalar_lea.vmem [#allocation3], 8
      %v272 = vld [vmem:[%s271] sm:$0xff]
      %v273 = vld [vmem:[#allocation2] sm:$0xff]
      %v274 = vld [vmem:[%s4] sm:$0x1]
      %v276 = vlaneseq
      %v277 = vshrl.u32 %v276, 7
      %v278 = vsub.s32 0, %v277
      %v279 = vrot.slane %v274, %v278
      %v281 = vadd.f32 %v273, %v279
      %v282 = vmul.f32 %v281, %v281
      %v283 = vsel %vm78, %v282, 0.0
      %284 = vadd.xlane.f32.xlu0 %v283
      %v285 = vpop.xlane.xlu0 %284
      %v286 = vmul.f32 %v272, %v272
      %v287 = vsel %vm78, %v286, 0.0
      %288 = vadd.xlane.f32.xlu0 %v287
      %v289 = vpop.xlane.xlu0 %288
      %v290 = vmax.f32 %v285, 1e-24
      %v291 = vrsqrt.pop %v290
      %v292 = vmul.f32 %v281, %v291
      %v293 = vmax.f32 %v289, 1e-24
      %v294 = vrsqrt.pop %v293
      %v295 = vmul.f32 %v272, %v294
      %v296 = vmul.f32 %v292, %v295
      %v297 = vsel %vm78, %v296, 0.0
      %298 = vadd.xlane.f32.xlu0 %v297
      %v299 = vpop.xlane.xlu0 %298
      %v300 = vrot.slane %v299, 4
      %v301 = vadd.f32 %v299, %v300
      %v302 = vrot.slane %v301, 2
      %v303 = vadd.f32 %v301, %v302
      %v304 = vrot.slane %v303, 1
      %v305 = vadd.f32 %v303, %v304
      %s306 = vtos %v305
      %s307 = ssub.f32 0.0, %s306
      %v308 = vrcp.pop 8.0
      %s309 = vtos %v308
      %s310 = smul.f32 %s307, %s309
      %s311 = scalar_lea.smem [#allocation9], 0
      %312 = sst [smem:[%s311]] %s310
    $region41: #{tpu_custom_call.1} parent=1 // pred_fallthru
      _
    // Predicated region
    $region42: #{tpu_custom_call.1} parent=1 // pred_check
      _
    $region43: #{tpu_custom_call.1} parent=1 // pred_check_branch
      %314 = sbr.rel (0) target = $region45
    $region44: #{tpu_custom_call.1} parent=1 // pred_region
      %s316 = ssub.s32 16, 16
      %317 = vsyncadd [#allocation5], %s316
      %320 = dma.smem_to_hbm [#allocation9], 16, %s5, [#allocation5]
    $region45: #{tpu_custom_call.1} parent=1 // pred_fallthru
      _
    // Predicated region
    $region46: #{tpu_custom_call.1} parent=1 // pred_check
      _
    $region47: #{tpu_custom_call.1} parent=1 // pred_check_branch
      %322 = sbr.rel (0) target = $region49
    $region48: #{tpu_custom_call.1} parent=1 // pred_region
      %323 = dma.done [#allocation5], 16
    $region49: #{tpu_custom_call.1} parent=1 // pred_fallthru
      _
    %324 = sfence
    %325 = vsyncpa [#allocation4], 1
    %326 = vsyncpa [#allocation7], 1
    %327 = vsyncpa [#allocation5], 1

</llo_original>
